<compile_context>
chip_gen: v7x
topology: tpu7x:2x2x1
jax: 0.10.0
libtpu: 0.0.40
codegen_flags: <defaults>
</compile_context>

<pallas_src>
import functools
import math

import jax
import jax.numpy as jnp
import numpy as np
from jax import lax
from jax.experimental import pallas as pl
from jax.experimental.pallas import tpu as pltpu


def _round_up(a, m):
    return (a + m - 1) // m * m


def _fraction_proposal_kernel(x_ref, w_ref, b_ref, tri_ref, out_ref,
                              *, N, eps, maxv, log_eps, log_max,
                              off_th, off_ent, off_raw, off_cl):
    # x stays in its native (possibly bf16) dtype through HBM->VMEM; cast after load.
    x = x_ref[...].astype(jnp.float32)            # (TB, in_dim)
    w = w_ref[...]                                # (in_dim, N) f32, 1/temp folded in
    b = b_ref[...]                                # (1, N)      f32, 1/temp folded in
    tri_pad = tri_ref[...]                        # (N, N+1), tri_pad[k, j] = 1 iff k < j

    # Linear layer on the MXU. 'scaled' == logits / temp (1/temp folded on host).
    # NOTE: ragged tail rows of the last batch tile may compute on garbage; those
    # rows are masked away on writeback, so any inf/NaN there is discarded.
    scaled = jnp.dot(x, w, preferred_element_type=jnp.float32) + b        # (TB, N)

    # softmax(scaled) == exp(log_softmax(scaled))
    m = jnp.max(scaled, axis=-1, keepdims=True)
    e = jnp.exp(scaled - m)
    denom = jnp.sum(e, axis=-1, keepdims=True)
    inv = pl.reciprocal(denom)                                            # (TB, 1)
    raw = e * inv                                                         # (TB, N)

    clamped = jnp.clip(raw, eps, maxv)
    # log(clamped) == clip(log_softmax, log(eps), log(max)) since log is monotone;
    # only a (TB,1) log remains instead of a second full-width transcendental.
    # (At clip boundaries this differs from log(e*inv) by rounding only.)
    clamped_log = jnp.clip(scaled - m - jnp.log(denom), log_eps, log_max)
    ent = -jnp.sum(clamped * clamped_log, axis=-1, keepdims=True)         # (TB, 1)

    # taus = [0, cumsum(clamped)] via a single padded upper-triangular matmul.
    # HIGHEST precision keeps the (N, N+1) matmul faithful to jnp.cumsum
    # (monotone taus) at negligible cost.
    taus = jnp.dot(clamped, tri_pad, preferred_element_type=jnp.float32,
                   precision=lax.Precision.HIGHEST)                       # (TB, N+1)
    tau_hats = taus[:, 1:] - 0.5 * clamped                                # (TB, N)

    # Lane-aligned slab sections (each offset is a multiple of 128), no lane
    # rotates on store. Pad columns between/after sections are left
    # uninitialized -- the wrapper never reads them.
    out_ref[:, 0:N + 1] = taus
    out_ref[:, off_th:off_th + N] = tau_hats
    out_ref[:, off_ent:off_ent + 1] = ent
    out_ref[:, off_raw:off_raw + N] = raw
    out_ref[:, off_cl:off_cl + N] = clamped


def fraction_proposal_forward(x, w_t, b, *, temp, eps, maxv):
    """x: (B, in_dim) float (f32 or bf16); w_t: (in_dim, N) pre-transposed
    nn.Linear weight; b: (N,)."""
    B, in_dim = x.shape
    _, N = w_t.shape

    # Fold 1/temp into the linear layer on the host (free constant folding).
    inv_temp = 1.0 / float(temp)
    w_s = (w_t.astype(jnp.float32) * inv_temp)
    b_s = (b.astype(jnp.float32) * inv_temp).reshape(1, N)

    # Host constant: padded upper-triangular matrix, tri_pad[k, j] = 1 iff k < j.
    tri_pad = jnp.asarray(
        np.arange(N)[:, None] < np.arange(N + 1)[None, :], dtype=jnp.float32)

    # Lane-aligned slab layout: [taus | tau_hats | ent | raw | clamped], every
    # section starting at a multiple of 128 lanes.
    sec_taus = _round_up(N + 1, 128)
    sec_n = _round_up(N, 128)
    off_th = sec_taus
    off_ent = off_th + sec_n
    off_raw = off_ent + 128
    off_cl = off_raw + sec_n
    c_pad = off_cl + sec_n

    x_itemsize = jnp.dtype(x.dtype).itemsize

    def _vmem_need(tb):
        x_buf = 2 * tb * _round_up(in_dim, 128) * x_itemsize          # x double-buffer
        slab_buf = 2 * tb * c_pad * 4                                 # slab double-buffer
        w_buf = 2 * in_dim * _round_up(N, 128) * 4                    # resident W
        misc = 2 * (8 * 128 + _round_up(N, 8) * _round_up(N + 1, 128)) * 4
        return x_buf + slab_buf + w_buf + misc

    # Batch tile: big enough to amortize the ~0.35us/step overhead, small enough
    # for v7x's 64 MiB VMEM, and guaranteeing >= 2 tiles whenever the batch
    # allows it (so both v7x TensorCores get work). No host-side pad of x.
    TB = 512
    if B >= 16:
        TB = min(TB, _round_up(pl.cdiv(B, 2), 8))   # at least two batch tiles
    else:
        TB = min(TB, _round_up(max(B, 1), 8))
    TB = max(TB, 8)
    while TB > 8 and _vmem_need(TB) > 40 * (1 << 20):
        TB = max(8, _round_up(TB // 2, 8))

    grid = pl.cdiv(B, TB)
    # Explicit scoped-VMEM limit: covers v5e's 16 MiB default when TB/in_dim are
    # large; capped below v7x's 64 MiB physical VMEM.
    vmem_limit = int(min(max(2 * _vmem_need(TB), 32 * (1 << 20)), 60 * (1 << 20)))

    # TODO(synk): if temp/eps/maxv vary at runtime, pass them as SMEM scalars
    # (PrefetchScalarGridSpec) instead of baking them in, to avoid recompiles.
    kern = functools.partial(
        _fraction_proposal_kernel, N=int(N),
        eps=float(eps), maxv=float(maxv),
        log_eps=float(math.log(eps)), log_max=float(math.log(maxv)),
        off_th=off_th, off_ent=off_ent, off_raw=off_raw, off_cl=off_cl)

    slab = pl.pallas_call(
        kern,
        out_shape=jax.ShapeDtypeStruct((B, c_pad), jnp.float32),
        grid_spec=pltpu.PrefetchScalarGridSpec(
            num_scalar_prefetch=0,
            grid=(grid,),
            in_specs=[
                pl.BlockSpec((TB, in_dim), lambda i: (i, 0)),   # x: tiled over batch
                pl.BlockSpec((in_dim, N), lambda i: (0, 0)),    # W: resident
                pl.BlockSpec((1, N), lambda i: (0, 0)),         # b: resident
                pl.BlockSpec((N, N + 1), lambda i: (0, 0)),     # tri_pad: resident
            ],
            out_specs=pl.BlockSpec((TB, c_pad), lambda i: (i, 0)),
        ),
        compiler_params=pltpu.CompilerParams(
            dimension_semantics=("parallel",),
            vmem_limit_bytes=vmem_limit),
    )(x, w_s, b_s, tri_pad)

    # Host-side views into the slab (only valid section columns are read; pad
    # columns are undefined by design). If a downstream consumer can take the
    # slab directly, slice at point of use to avoid these small HBM copies.
    taus = slab[:, 0:N + 1]
    tau_hats = slab[:, off_th:off_th + N]
    ent = slab[:, off_ent]
    raw = slab[:, off_raw:off_raw + N]
    clamped = slab[:, off_cl:off_cl + N]
    return taus, tau_hats, ent, raw, clamped


def _reference(x, w_t, b, temp, eps, maxv):
    logits = x.astype(jnp.float32) @ w_t + b
    lp = jax.nn.log_softmax(logits / temp, axis=-1)
    raw = jnp.exp(lp)
    clamped = jnp.clip(raw, eps, maxv)
    ent = -jnp.sum(clamped * jnp.log(clamped), axis=-1)
    cums = jnp.cumsum(clamped, axis=-1)
    taus = jnp.concatenate([jnp.zeros((x.shape[0], 1), jnp.float32), cums], axis=-1)
    tau_hats = 0.5 * (taus[:, :-1] + taus[:, 1:])
    return taus, tau_hats, ent, raw, clamped


if __name__ == "__main__":
    # Small, deterministic config consistent with FQF:
    B, in_dim, N = 2, 32, 8
    temp, eps, maxv = 0.5, 1e-3, 0.999   # temp=0.5 exercises the 1/temp folding exactly

    key = jax.random.PRNGKey(0)
    kx, kw = jax.random.split(key)

    x = jax.random.normal(kx, (B, in_dim), dtype=jnp.float32)

    # nn.Linear(in_dim, N): weight (N, in_dim) xavier_uniform, bias zeros.
    limit = float(np.sqrt(6.0 / (in_dim + N)))
    w = jax.random.uniform(kw, (N, in_dim), dtype=jnp.float32,
                           minval=-limit, maxval=limit)
    b = jnp.zeros((N,), dtype=jnp.float32)
    w_t = w.T  # (in_dim, N) layout used by the kernel

    outs = fraction_proposal_forward(x, w_t, b, temp=temp, eps=eps, maxv=maxv)
    outs = jax.block_until_ready(outs)

    refs = _reference(x, w_t, b, temp, eps, maxv)
    for o, r in zip(outs, refs):
        np.testing.assert_allclose(np.asarray(o), np.asarray(r),
                                   rtol=1e-5, atol=1e-5)

    print("KERNEL_OK")
</pallas_src>

<mosaic_0001>
module attributes {stable_mosaic.version = 11 : i64} {
  func.func @_fraction_proposal_kernel(%arg0: i32, %arg1: memref<8x32xf32, #tpu.memory_space<vmem>>, %arg2: memref<32x8xf32, #tpu.memory_space<vmem>>, %arg3: memref<1x8xf32, #tpu.memory_space<vmem>>, %arg4: memref<8x9xf32, #tpu.memory_space<vmem>>, %arg5: memref<8x640xf32, #tpu.memory_space<vmem>>) attributes {dimension_semantics = [#tpu.dimension_semantics<parallel>], iteration_bounds = array<i64: 1>, scalar_prefetch = 0 : i64, scratch_operands = 0 : i64, tpu.core_type = #tpu.core_type<tc>, window_params = [{transform_indices = @transform_0, window_bounds = array<i64: 8, 32>}, {pipeline_mode = #tpu.pipeline_mode<synchronous>, transform_indices = @transform_1, window_bounds = array<i64: 32, 8>}, {pipeline_mode = #tpu.pipeline_mode<synchronous>, transform_indices = @transform_2, window_bounds = array<i64: 1, 8>}, {pipeline_mode = #tpu.pipeline_mode<synchronous>, transform_indices = @transform_3, window_bounds = array<i64: 8, 9>}, {transform_indices = @transform_4, window_bounds = array<i64: 8, 640>}]} {
    %c0 = arith.constant 0 : index
    %c0_0 = arith.constant 0 : index
    %0 = vector.load %arg1[%c0, %c0_0] : memref<8x32xf32, #tpu.memory_space<vmem>>, vector<8x32xf32>
    %c0_1 = arith.constant 0 : index
    %c0_2 = arith.constant 0 : index
    %1 = vector.load %arg2[%c0_1, %c0_2] : memref<32x8xf32, #tpu.memory_space<vmem>>, vector<32x8xf32>
    %c0_3 = arith.constant 0 : index
    %c0_4 = arith.constant 0 : index
    %2 = vector.load %arg3[%c0_3, %c0_4] : memref<1x8xf32, #tpu.memory_space<vmem>>, vector<1x8xf32>
    %c0_5 = arith.constant 0 : index
    %c0_6 = arith.constant 0 : index
    %3 = vector.load %arg4[%c0_5, %c0_6] : memref<8x9xf32, #tpu.memory_space<vmem>>, vector<8x9xf32>
    %cst = arith.constant dense<0.000000e+00> : vector<8x8xf32>
    %4 = tpu.matmul %0, %1, %cst {dimension_numbers = #tpu.dot_dimension_numbers<[1], [0], [0], [1], [0, 0, 1, 1], [], []>} : vector<8x32xf32>, vector<32x8xf32>, vector<8x8xf32> -> vector<8x8xf32>
    %5 = vector.broadcast %2 : vector<1x8xf32> to vector<8x8xf32>
    %6 = arith.addf %4, %5 : vector<8x8xf32>
    %cst_7 = arith.constant dense<0xFF800000> : vector<8xf32>
    %7 = vector.multi_reduction <maximumf>, %6, %cst_7 [1] : vector<8x8xf32> to vector<8xf32>
    %8 = vector.shape_cast %7 : vector<8xf32> to vector<8x1xf32>
    %9 = vector.broadcast %8 : vector<8x1xf32> to vector<8x8xf32>
    %10 = arith.subf %6, %9 : vector<8x8xf32>
    %11 = math.exp %10 : vector<8x8xf32>
    %cst_8 = arith.constant dense<0.000000e+00> : vector<8xf32>
    %12 = vector.multi_reduction <add>, %11, %cst_8 [1] : vector<8x8xf32> to vector<8xf32>
    %13 = vector.shape_cast %12 : vector<8xf32> to vector<8x1xf32>
    %14 = tpu.reciprocal %13 : vector<8x1xf32> -> vector<8x1xf32>
    %15 = vector.broadcast %14 : vector<8x1xf32> to vector<8x8xf32>
    %16 = arith.mulf %11, %15 : vector<8x8xf32>
    %cst_9 = arith.constant 1.000000e-03 : f32
    %cst_10 = arith.constant 9.990000e-01 : f32
    %17 = vector.broadcast %cst_9 : f32 to vector<8x8xf32>
    %18 = arith.maximumf %17, %16 : vector<8x8xf32>
    %19 = vector.broadcast %cst_10 : f32 to vector<8x8xf32>
    %20 = arith.minimumf %19, %18 : vector<8x8xf32>
    %21 = vector.broadcast %8 : vector<8x1xf32> to vector<8x8xf32>
    %22 = arith.subf %6, %21 : vector<8x8xf32>
    %23 = math.log %13 : vector<8x1xf32>
    %24 = vector.broadcast %23 : vector<8x1xf32> to vector<8x8xf32>
    %25 = arith.subf %22, %24 : vector<8x8xf32>
    %cst_11 = arith.constant -6.90775537 : f32
    %cst_12 = arith.constant -0.00100050028 : f32
    %26 = vector.broadcast %cst_11 : f32 to vector<8x8xf32>
    %27 = arith.maximumf %26, %25 : vector<8x8xf32>
    %28 = vector.broadcast %cst_12 : f32 to vector<8x8xf32>
    %29 = arith.minimumf %28, %27 : vector<8x8xf32>
    %30 = arith.mulf %20, %29 : vector<8x8xf32>
    %cst_13 = arith.constant dense<0.000000e+00> : vector<8xf32>
    %31 = vector.multi_reduction <add>, %30, %cst_13 [1] : vector<8x8xf32> to vector<8xf32>
    %32 = vector.shape_cast %31 : vector<8xf32> to vector<8x1xf32>
    %cst_14 = arith.constant 0.000000e+00 : f32
    %33 = vector.broadcast %cst_14 : f32 to vector<8x1xf32>
    %34 = arith.subf %33, %32 : vector<8x1xf32>
    %cst_15 = arith.constant dense<0.000000e+00> : vector<8x9xf32>
    %35 = tpu.matmul %20, %3, %cst_15 {dimension_numbers = #tpu.dot_dimension_numbers<[1], [0], [0], [1], [0, 0, 1, 1], [], []>, precision = #tpu.contract_precision<fp32>} : vector<8x8xf32>, vector<8x9xf32>, vector<8x9xf32> -> vector<8x9xf32>
    %36 = vector.extract_strided_slice %35 {offsets = [0, 1], sizes = [8, 8], strides = [1, 1]} : vector<8x9xf32> to vector<8x8xf32>
    %cst_16 = arith.constant 5.000000e-01 : f32
    %37 = vector.broadcast %cst_16 : f32 to vector<8x8xf32>
    %38 = arith.mulf %37, %20 : vector<8x8xf32>
    %39 = arith.subf %36, %38 : vector<8x8xf32>
    %c0_17 = arith.constant 0 : index
    %c0_18 = arith.constant 0 : index
    %40 = vector.load %arg5[%c0_17, %c0_18] : memref<8x640xf32, #tpu.memory_space<vmem>>, vector<8x9xf32>
    tpu.vector_store %arg5[%c0_17, %c0_18], %35 {strides = array<i32>} : memref<8x640xf32, #tpu.memory_space<vmem>>, vector<8x9xf32>,
    %c0_19 = arith.constant 0 : index
    %c128 = arith.constant 128 : index
    %41 = vector.load %arg5[%c0_19, %c128] : memref<8x640xf32, #tpu.memory_space<vmem>>, vector<8x8xf32>
    tpu.vector_store %arg5[%c0_19, %c128], %39 {strides = array<i32>} : memref<8x640xf32, #tpu.memory_space<vmem>>, vector<8x8xf32>,
    %c0_20 = arith.constant 0 : index
    %c256 = arith.constant 256 : index
    %42 = vector.load %arg5[%c0_20, %c256] : memref<8x640xf32, #tpu.memory_space<vmem>>, vector<8x1xf32>
    tpu.vector_store %arg5[%c0_20, %c256], %34 {strides = array<i32>} : memref<8x640xf32, #tpu.memory_space<vmem>>, vector<8x1xf32>,
    %c0_21 = arith.constant 0 : index
    %c384 = arith.constant 384 : index
    %43 = vector.load %arg5[%c0_21, %c384] : memref<8x640xf32, #tpu.memory_space<vmem>>, vector<8x8xf32>
    tpu.vector_store %arg5[%c0_21, %c384], %16 {strides = array<i32>} : memref<8x640xf32, #tpu.memory_space<vmem>>, vector<8x8xf32>,
    %c0_22 = arith.constant 0 : index
    %c512 = arith.constant 512 : index
    %44 = vector.load %arg5[%c0_22, %c512] : memref<8x640xf32, #tpu.memory_space<vmem>>, vector<8x8xf32>
    tpu.vector_store %arg5[%c0_22, %c512], %20 {strides = array<i32>} : memref<8x640xf32, #tpu.memory_space<vmem>>, vector<8x8xf32>,
    return
  }
  func.func @transform_0(%arg0: i32) -> (i32, i32) {
    %c0_i32 = arith.constant 0 : i32
    %c0_i32_0 = arith.constant 0 : i32
    return %arg0, %c0_i32 : i32, i32
  }
  func.func @transform_1(%arg0: i32) -> (i32, i32) {
    %c0_i32 = arith.constant 0 : i32
    %c0_i32_0 = arith.constant 0 : i32
    %c0_i32_1 = arith.constant 0 : i32
    return %c0_i32, %c0_i32_0 : i32, i32
  }
  func.func @transform_2(%arg0: i32) -> (i32, i32) {
    %c0_i32 = arith.constant 0 : i32
    %c0_i32_0 = arith.constant 0 : i32
    %c0_i32_1 = arith.constant 0 : i32
    return %c0_i32, %c0_i32_0 : i32, i32
  }
  func.func @transform_3(%arg0: i32) -> (i32, i32) {
    %c0_i32 = arith.constant 0 : i32
    %c0_i32_0 = arith.constant 0 : i32
    %c0_i32_1 = arith.constant 0 : i32
    return %c0_i32, %c0_i32_0 : i32, i32
  }
  func.func @transform_4(%arg0: i32) -> (i32, i32) {
    %c0_i32 = arith.constant 0 : i32
    %c0_i32_0 = arith.constant 0 : i32
    return %arg0, %c0_i32 : i32, i32
  }
}

</mosaic_0001>

<llo_original>
// kernel: tpu_custom_call.1
$region0: #{tpu_custom_call.1}
  #allocation0 [shape = 'u32[]', space=smem, size = 0x4, offset = 0x4, fixed_abs, tag = 'smem constant byte address 0x4 - core index']
  #allocation1 [shape = 'u32[144,128]{1,0:T(1,128)}', space=vmem, size = 0x12000, scoped, tag = 'internal scratch']
  %s0 = inlined_call_operand.vmem [shape: f32[2,32], index: 0, kind: input, shape index: {}]
  %s1 = inlined_call_operand.vmem [shape: f32[32,8], index: 1, kind: input, shape index: {}]
  %s2 = inlined_call_operand.vmem [shape: f32[1,8], index: 2, kind: input, shape index: {}]
  %s3 = inlined_call_operand.vmem [shape: f32[8,9], index: 3, kind: input, shape index: {}]
  %s4 = inlined_call_operand.hbm [shape: f32[2,640], index: 4, kind: output, shape index: {}]
  %s5 = sld [smem:[#allocation0]]
  $region26: #{tpu_custom_call.1} parent=0
    _
  %s7 = ssub.s32 1, %s5
  %s8 = scalar_select 0, %s7, %s5
  $region1: #{tpu_custom_call.1} parent=0
    #allocation2 [shape = 'u8[20480]{0}', space=vmem, size = 0x5000, scoped, tag = 'output window, operand 0, single buffered']
    #allocation3 [shape = 's32[1]{0}', space=sflag, size = 0x4, scoped, tag = 'scoped memory for tpu_custom_call.1']
    %9 = vsyncpa [#allocation3], 0
    // Predicated region
    $region2: #{tpu_custom_call.1} parent=1 // pred_check
      _
    $region3: #{tpu_custom_call.1} parent=1 // pred_check_branch
      %11 = sbr.rel (0) target = $region5
    $region4: #{tpu_custom_call.1} parent=1 // pred_region
      _
    $region5: #{tpu_custom_call.1} parent=1 // pred_fallthru
      _
    // Predicated region
    $region6: #{tpu_custom_call.1} parent=1 // pred_check
      _
    $region7: #{tpu_custom_call.1} parent=1 // pred_check_branch
      %13 = sbr.rel (0) target = $region9
    $region8: #{tpu_custom_call.1} parent=1 // pred_region
      _
    $region9: #{tpu_custom_call.1} parent=1 // pred_fallthru
      _
    // Predicated region
    $region10: #{tpu_custom_call.1} parent=1 // pred_check
      _
    $region11: #{tpu_custom_call.1} parent=1 // pred_check_branch
      %15 = sbr.rel (0) target = $region13
    $region12: #{tpu_custom_call.1} parent=1 // pred_region
      _
    $region13: #{tpu_custom_call.1} parent=1 // pred_fallthru
      _
    // Predicated region
    $region14: #{tpu_custom_call.1} parent=1 // pred_check
      _
    $region15: #{tpu_custom_call.1} parent=1 // pred_check_branch
      %17 = sbr.rel (0) target = $region17
    $region16: #{tpu_custom_call.1} parent=1 // pred_region
      _
    $region17: #{tpu_custom_call.1} parent=1 // pred_fallthru
      _
    %v18 = vld [vmem:[%s0] sm:$0xff]
    %v19 = vld [vmem:[%s1] sm:$0xff]
    %v20 = vld [vmem:[%s1 + $0x8] sm:$0xff]
    %v21 = vld [vmem:[%s1 + $0x10] sm:$0xff]
    %v22 = vld [vmem:[%s1 + $0x18] sm:$0xff]
    %v23 = vld [vmem:[%s2] sm:$0x1]
    %v24 = vld [vmem:[%s3] sm:$0xff]
    %v26 = vlaneseq
    %v27 = vshrl.u32 %v26, 7
    %v28 = vsub.s32 0, %v27
    %v29 = vrot.slane %v23, %v28
    %vm31 = vcmask 261120
    %v33 = vsel %vm31, %v18, 0
    %35 = vmatprep.subr.mxu0 0.0
    %36 = vmatpush1.msra.mxu0 %v19
    %37 = vmatprep.subr.mxu0 0.0
    %38 = vmatpush1.msra.mxu0 %v20
    %39 = vmatprep.subr.mxu0 0.0
    %40 = vmatpush1.msra.mxu0 %v21
    %41 = vmatprep.subr.mxu0 0.0
    %42 = vmatpush1.msra.mxu0 %v22
    %43 = vmatprep.subr.mxu0 0.0
    %44 = vmatpush1.msra.mxu0 0.0
    %45 = vmatprep.subr.mxu0 0.0
    %46 = vmatpush1.msra.mxu0 0.0
    %47 = vmatprep.subr.mxu0 0.0
    %48 = vmatpush1.msra.mxu0 0.0
    %49 = vmatprep.subr.mxu0 0.0
    %50 = vmatpush1.msra.mxu0 0.0
    %51 = vmatprep.subr.mxu0 0.0
    %52 = vmatpush1.msra.mxu0 0.0
    %53 = vmatprep.subr.mxu0 0.0
    %54 = vmatpush1.msra.mxu0 0.0
    %55 = vmatprep.subr.mxu0 0.0
    %56 = vmatpush1.msra.mxu0 0.0
    %57 = vmatprep.subr.mxu0 0.0
    %58 = vmatpush1.msra.mxu0 0.0
    %59 = vmatprep.subr.mxu0 0.0
    %60 = vmatpush1.msra.mxu0 0.0
    %61 = vmatprep.subr.mxu0 0.0
    %62 = vmatpush1.msra.mxu0 0.0
    %63 = vmatprep.subr.mxu0 0.0
    %64 = vmatpush1.msra.mxu0 0.0
    %65 = vmatprep.subr.mxu0 0.0
    %66 = vmatpush1.msra.mxu0 0.0
    %67 = vmatprep.subr.mxu0 0.0
    %68 = vmatpush1.msra.mxu0 0.0
    %69 = vmatprep.subr.mxu0 0.0
    %70 = vmatpush1.msra.mxu0 0.0
    %71 = vmatprep.subr.mxu0 0.0
    %72 = vmatpush1.msra.mxu0 0.0
    %73 = vmatprep.subr.mxu0 0.0
    %74 = vmatpush1.msra.mxu0 0.0
    %75 = vmatprep.subr.mxu0 0.0
    %76 = vmatpush1.msra.mxu0 0.0
    %77 = vmatprep.subr.mxu0 0.0
    %78 = vmatpush1.msra.mxu0 0.0
    %79 = vmatprep.subr.mxu0 0.0
    %80 = vmatpush1.msra.mxu0 0.0
    %81 = vmatprep.subr.mxu0 0.0
    %82 = vmatpush1.msra.mxu0 0.0
    %83 = vmatprep.subr.mxu0 0.0
    %84 = vmatpush1.msra.mxu0 0.0
    %85 = vmatprep.subr.mxu0 0.0
    %86 = vmatpush1.msra.mxu0 0.0
    %87 = vmatprep.subr.mxu0 0.0
    %88 = vmatpush1.msra.mxu0 0.0
    %89 = vmatprep.subr.mxu0 0.0
    %90 = vmatpush1.msra.mxu0 0.0
    %91 = vmatprep.subr.mxu0 0.0
    %92 = vmatpush1.msra.mxu0 0.0
    %93 = vmatprep.subr.mxu0 0.0
    %94 = vmatpush1.msra.mxu0 0.0
    %95 = vmatprep.subr.mxu0 0.0
    %96 = vmatpush1.msra.mxu0 0.0
    %97 = vmatprep.subr.mxu0 0.0
    %98 = vmatpush1.msra.mxu0 0.0
    %99 = vmatprep.mubr.f32.mxu0 0.0
    %100 = vmatmul.mubr.f32.gmra.mrb[0].mxu0 %v33
    %v101 = vpop.f32.mrb[0].mxu0
    %v102 = vadd.f32 %v29, %v101
    %v103 = vpop.f32.mrb[0].mxu0
    %104 = vdwg.mxu0
    %vm105 = vcmask 64512
    %v106 = vsel %vm105, %v102, -inf
    %107 = vmax.xlane.f32.xlu0 %v106
    %v108 = vpop.xlane.xlu0 %107
    %v109 = vsub.f32 %v102, %v108
    %v110 = vmul.f32 %v109, 1.442695
    %v111 = vpow.pop %v110
    %v112 = vsel %vm105, %v111, 0.0
    %113 = vadd.xlane.f32.xlu0 %v112
    %v114 = vpop.xlane.xlu0 %113
    %v115 = vrcp.pop %v114
    %v116 = vmul.f32 %v111, %v115
    %v117 = vmax.f32 %v116, 0.001
    %v118 = vmin.f32 %v117, 0.999
    %v119 = vlog2.pop %v114
    %v120 = vmul.f32 %v119, 0.6931472
    %v121 = vsub.f32 %v109, %v120
    %v122 = vmax.f32 %v121, -6.9077554
    %v123 = vmin.f32 %v122, -0.0010005003
    %v124 = vmul.f32 %v118, %v123
    %v125 = vsel %vm105, %v124, 0.0
    %126 = vadd.xlane.f32.xlu0 %v125
    %v127 = vpop.xlane.xlu0 %126
    %v128 = vsub.f32 0.0, %v127
    %v130 = vsel %vm105, %v118, 0
    %132 = vmatprep.subr.mxu0 0.0
    %v133 = vand.u32 %v24, 4294901760
    %134 = vmatpush1.msra.mxu0 %v133
    %135 = vmatprep.subr.mxu0 0.0
    %136 = vmatpush1.msra.mxu0 0.0
    %137 = vmatprep.subr.mxu0 0.0
    %138 = vmatpush1.msra.mxu0 0.0
    %139 = vmatprep.subr.mxu0 0.0
    %140 = vmatpush1.msra.mxu0 0.0
    %141 = vmatprep.subr.mxu0 0.0
    %142 = vmatpush1.msra.mxu0 0.0
    %143 = vmatprep.subr.mxu0 0.0
    %144 = vmatpush1.msra.mxu0 0.0
    %145 = vmatprep.subr.mxu0 0.0
    %146 = vmatpush1.msra.mxu0 0.0
    %147 = vmatprep.subr.mxu0 0.0
    %148 = vmatpush1.msra.mxu0 0.0
    %149 = vmatprep.subr.mxu0 0.0
    %150 = vmatpush1.msra.mxu0 0.0
    %151 = vmatprep.subr.mxu0 0.0
    %152 = vmatpush1.msra.mxu0 0.0
    %153 = vmatprep.subr.mxu0 0.0
    %154 = vmatpush1.msra.mxu0 0.0
    %155 = vmatprep.subr.mxu0 0.0
    %156 = vmatpush1.msra.mxu0 0.0
    %157 = vmatprep.subr.mxu0 0.0
    %158 = vmatpush1.msra.mxu0 0.0
    %159 = vmatprep.subr.mxu0 0.0
    %160 = vmatpush1.msra.mxu0 0.0
    %161 = vmatprep.subr.mxu0 0.0
    %162 = vmatpush1.msra.mxu0 0.0
    %163 = vmatprep.subr.mxu0 0.0
    %164 = vmatpush1.msra.mxu0 0.0
    %165 = vmatprep.subr.mxu0 0.0
    %166 = vmatpush1.msra.mxu0 0.0
    %167 = vmatprep.subr.mxu0 0.0
    %168 = vmatpush1.msra.mxu0 0.0
    %169 = vmatprep.subr.mxu0 0.0
    %170 = vmatpush1.msra.mxu0 0.0
    %171 = vmatprep.subr.mxu0 0.0
    %172 = vmatpush1.msra.mxu0 0.0
    %173 = vmatprep.subr.mxu0 0.0
    %174 = vmatpush1.msra.mxu0 0.0
    %175 = vmatprep.subr.mxu0 0.0
    %176 = vmatpush1.msra.mxu0 0.0
    %177 = vmatprep.subr.mxu0 0.0
    %178 = vmatpush1.msra.mxu0 0.0
    %179 = vmatprep.subr.mxu0 0.0
    %180 = vmatpush1.msra.mxu0 0.0
    %181 = vmatprep.subr.mxu0 0.0
    %182 = vmatpush1.msra.mxu0 0.0
    %183 = vmatprep.subr.mxu0 0.0
    %184 = vmatpush1.msra.mxu0 0.0
    %185 = vmatprep.subr.mxu0 0.0
    %186 = vmatpush1.msra.mxu0 0.0
    %187 = vmatprep.subr.mxu0 0.0
    %188 = vmatpush1.msra.mxu0 0.0
    %189 = vmatprep.subr.mxu0 0.0
    %190 = vmatpush1.msra.mxu0 0.0
    %191 = vmatprep.subr.mxu0 0.0
    %192 = vmatpush1.msra.mxu0 0.0
    %193 = vmatprep.subr.mxu0 0.0
    %194 = vmatpush1.msra.mxu0 0.0
    %195 = vmatprep.subr.mxu0 0.0
    %196 = vmatpush1.msra.mxu0 0.0
    %197 = vmatprep.mubr.f32.mxu0 0.0
    %v198 = vand.u32 %v130, 4294901760
    %v199 = vsub.f32 %v130, %v198
    %v200 = vand.u32 %v199, 4294901760
    %v201 = vsub.f32 %v199, %v200
    %v202 = vand.u32 %v201, 4294901760
    %203 = vmatmul.mubr.f32.gmra.mrb[0].mxu0 %v202
    %v204 = vpop.f32.mrb[0].mxu0
    %v205 = vadd.f32 0.0, %v204
    %v206 = vpop.f32.mrb[0].mxu0
    %207 = vdwg.mxu0
    %208 = vmatprep.subr.mxu0 0.0
    %v209 = vand.u32 %v24, 4294901760
    %v210 = vsub.f32 %v24, %v209
    %v211 = vand.u32 %v210, 4294901760
    %v212 = vsub.f32 %v210, %v211
    %v213 = vand.u32 %v212, 4294901760
    %214 = vmatpush1.msra.mxu0 %v213
    %215 = vmatprep.subr.mxu0 0.0
    %216 = vmatpush1.msra.mxu0 0.0
    %217 = vmatprep.subr.mxu0 0.0
    %218 = vmatpush1.msra.mxu0 0.0
    %219 = vmatprep.subr.mxu0 0.0
    %220 = vmatpush1.msra.mxu0 0.0
    %221 = vmatprep.subr.mxu0 0.0
    %222 = vmatpush1.msra.mxu0 0.0
    %223 = vmatprep.subr.mxu0 0.0
    %224 = vmatpush1.msra.mxu0 0.0
    %225 = vmatprep.subr.mxu0 0.0
    %226 = vmatpush1.msra.mxu0 0.0
    %227 = vmatprep.subr.mxu0 0.0
    %228 = vmatpush1.msra.mxu0 0.0
    %229 = vmatprep.subr.mxu0 0.0
    %230 = vmatpush1.msra.mxu0 0.0
    %231 = vmatprep.subr.mxu0 0.0
    %232 = vmatpush1.msra.mxu0 0.0
    %233 = vmatprep.subr.mxu0 0.0
    %234 = vmatpush1.msra.mxu0 0.0
    %235 = vmatprep.subr.mxu0 0.0
    %236 = vmatpush1.msra.mxu0 0.0
    %237 = vmatprep.subr.mxu0 0.0
    %238 = vmatpush1.msra.mxu0 0.0
    %239 = vmatprep.subr.mxu0 0.0
    %240 = vmatpush1.msra.mxu0 0.0
    %241 = vmatprep.subr.mxu0 0.0
    %242 = vmatpush1.msra.mxu0 0.0
    %243 = vmatprep.subr.mxu0 0.0
    %244 = vmatpush1.msra.mxu0 0.0
    %245 = vmatprep.subr.mxu0 0.0
    %246 = vmatpush1.msra.mxu0 0.0
    %247 = vmatprep.subr.mxu0 0.0
    %248 = vmatpush1.msra.mxu0 0.0
    %249 = vmatprep.subr.mxu0 0.0
    %250 = vmatpush1.msra.mxu0 0.0
    %251 = vmatprep.subr.mxu0 0.0
    %252 = vmatpush1.msra.mxu0 0.0
    %253 = vmatprep.subr.mxu0 0.0
    %254 = vmatpush1.msra.mxu0 0.0
    %255 = vmatprep.subr.mxu0 0.0
    %256 = vmatpush1.msra.mxu0 0.0
    %257 = vmatprep.subr.mxu0 0.0
    %258 = vmatpush1.msra.mxu0 0.0
    %259 = vmatprep.subr.mxu0 0.0
    %260 = vmatpush1.msra.mxu0 0.0
    %261 = vmatprep.subr.mxu0 0.0
    %262 = vmatpush1.msra.mxu0 0.0
    %263 = vmatprep.subr.mxu0 0.0
    %264 = vmatpush1.msra.mxu0 0.0
    %265 = vmatprep.subr.mxu0 0.0
    %266 = vmatpush1.msra.mxu0 0.0
    %267 = vmatprep.subr.mxu0 0.0
    %268 = vmatpush1.msra.mxu0 0.0
    %269 = vmatprep.subr.mxu0 0.0
    %270 = vmatpush1.msra.mxu0 0.0
    %271 = vmatprep.subr.mxu0 0.0
    %272 = vmatpush1.msra.mxu0 0.0
    %273 = vmatprep.subr.mxu0 0.0
    %274 = vmatpush1.msra.mxu0 0.0
    %275 = vmatprep.subr.mxu0 0.0
    %276 = vmatpush1.msra.mxu0 0.0
    %277 = vmatprep.mubr.f32.mxu0 0.0
    %v278 = vand.u32 %v130, 4294901760
    %279 = vmatmul.mubr.f32.gmra.mrb[0].mxu0 %v278
    %v280 = vpop.f32.mrb[0].mxu0
    %v281 = vadd.f32 %v205, %v280
    %v282 = vpop.f32.mrb[0].mxu0
    %283 = vdwg.mxu0
    %284 = vmatprep.subr.mxu0 0.0
    %v285 = vand.u32 %v24, 4294901760
    %v286 = vsub.f32 %v24, %v285
    %287 = vmatpush1.msra.mxu0 %v286
    %288 = vmatprep.subr.mxu0 0.0
    %289 = vmatpush1.msra.mxu0 0.0
    %290 = vmatprep.subr.mxu0 0.0
    %291 = vmatpush1.msra.mxu0 0.0
    %292 = vmatprep.subr.mxu0 0.0
    %293 = vmatpush1.msra.mxu0 0.0
    %294 = vmatprep.subr.mxu0 0.0
    %295 = vmatpush1.msra.mxu0 0.0
    %296 = vmatprep.subr.mxu0 0.0
    %297 = vmatpush1.msra.mxu0 0.0
    %298 = vmatprep.subr.mxu0 0.0
    %299 = vmatpush1.msra.mxu0 0.0
    %300 = vmatprep.subr.mxu0 0.0
    %301 = vmatpush1.msra.mxu0 0.0
    %302 = vmatprep.subr.mxu0 0.0
    %303 = vmatpush1.msra.mxu0 0.0
    %304 = vmatprep.subr.mxu0 0.0
    %305 = vmatpush1.msra.mxu0 0.0
    %306 = vmatprep.subr.mxu0 0.0
    %307 = vmatpush1.msra.mxu0 0.0
    %308 = vmatprep.subr.mxu0 0.0
    %309 = vmatpush1.msra.mxu0 0.0
    %310 = vmatprep.subr.mxu0 0.0
    %311 = vmatpush1.msra.mxu0 0.0
    %312 = vmatprep.subr.mxu0 0.0
    %313 = vmatpush1.msra.mxu0 0.0
    %314 = vmatprep.subr.mxu0 0.0
    %315 = vmatpush1.msra.mxu0 0.0
    %316 = vmatprep.subr.mxu0 0.0
    %317 = vmatpush1.msra.mxu0 0.0
    %318 = vmatprep.subr.mxu0 0.0
    %319 = vmatpush1.msra.mxu0 0.0
    %320 = vmatprep.subr.mxu0 0.0
    %321 = vmatpush1.msra.mxu0 0.0
    %322 = vmatprep.subr.mxu0 0.0
    %323 = vmatpush1.msra.mxu0 0.0
    %324 = vmatprep.subr.mxu0 0.0
    %325 = vmatpush1.msra.mxu0 0.0
    %326 = vmatprep.subr.mxu0 0.0
    %327 = vmatpush1.msra.mxu0 0.0
    %328 = vmatprep.subr.mxu0 0.0
    %329 = vmatpush1.msra.mxu0 0.0
    %330 = vmatprep.subr.mxu0 0.0
    %331 = vmatpush1.msra.mxu0 0.0
    %332 = vmatprep.subr.mxu0 0.0
    %333 = vmatpush1.msra.mxu0 0.0
    %334 = vmatprep.subr.mxu0 0.0
    %335 = vmatpush1.msra.mxu0 0.0
    %336 = vmatprep.subr.mxu0 0.0
    %337 = vmatpush1.msra.mxu0 0.0
    %338 = vmatprep.subr.mxu0 0.0
    %339 = vmatpush1.msra.mxu0 0.0
    %340 = vmatprep.subr.mxu0 0.0
    %341 = vmatpush1.msra.mxu0 0.0
    %342 = vmatprep.subr.mxu0 0.0
    %343 = vmatpush1.msra.mxu0 0.0
    %344 = vmatprep.subr.mxu0 0.0
    %345 = vmatpush1.msra.mxu0 0.0
    %346 = vmatprep.subr.mxu0 0.0
    %347 = vmatpush1.msra.mxu0 0.0
    %348 = vmatprep.subr.mxu0 0.0
    %349 = vmatpush1.msra.mxu0 0.0
    %350 = vmatprep.mubr.f32.mxu0 0.0
    %v351 = vand.u32 %v130, 4294901760
    %v352 = vsub.f32 %v130, %v351
    %353 = vmatmul.mubr.f32.gmra.mrb[0].mxu0 %v352
    %v354 = vpop.f32.mrb[0].mxu0
    %v355 = vadd.f32 %v281, %v354
    %v356 = vpop.f32.mrb[0].mxu0
    %357 = vdwg.mxu0
    %358 = vmatprep.subr.mxu0 0.0
    %v359 = vand.u32 %v24, 4294901760
    %360 = vmatpush1.msra.mxu0 %v359
    %361 = vmatprep.subr.mxu0 0.0
    %362 = vmatpush1.msra.mxu0 0.0
    %363 = vmatprep.subr.mxu0 0.0
    %364 = vmatpush1.msra.mxu0 0.0
    %365 = vmatprep.subr.mxu0 0.0
    %366 = vmatpush1.msra.mxu0 0.0
    %367 = vmatprep.subr.mxu0 0.0
    %368 = vmatpush1.msra.mxu0 0.0
    %369 = vmatprep.subr.mxu0 0.0
    %370 = vmatpush1.msra.mxu0 0.0
    %371 = vmatprep.subr.mxu0 0.0
    %372 = vmatpush1.msra.mxu0 0.0
    %373 = vmatprep.subr.mxu0 0.0
    %374 = vmatpush1.msra.mxu0 0.0
    %375 = vmatprep.subr.mxu0 0.0
    %376 = vmatpush1.msra.mxu0 0.0
    %377 = vmatprep.subr.mxu0 0.0
    %378 = vmatpush1.msra.mxu0 0.0
    %379 = vmatprep.subr.mxu0 0.0
    %380 = vmatpush1.msra.mxu0 0.0
    %381 = vmatprep.subr.mxu0 0.0
    %382 = vmatpush1.msra.mxu0 0.0
    %383 = vmatprep.subr.mxu0 0.0
    %384 = vmatpush1.msra.mxu0 0.0
    %385 = vmatprep.subr.mxu0 0.0
    %386 = vmatpush1.msra.mxu0 0.0
    %387 = vmatprep.subr.mxu0 0.0
    %388 = vmatpush1.msra.mxu0 0.0
    %389 = vmatprep.subr.mxu0 0.0
    %390 = vmatpush1.msra.mxu0 0.0
    %391 = vmatprep.subr.mxu0 0.0
    %392 = vmatpush1.msra.mxu0 0.0
    %393 = vmatprep.subr.mxu0 0.0
    %394 = vmatpush1.msra.mxu0 0.0
    %395 = vmatprep.subr.mxu0 0.0
    %396 = vmatpush1.msra.mxu0 0.0
    %397 = vmatprep.subr.mxu0 0.0
    %398 = vmatpush1.msra.mxu0 0.0
    %399 = vmatprep.subr.mxu0 0.0
    %400 = vmatpush1.msra.mxu0 0.0
    %401 = vmatprep.subr.mxu0 0.0
    %402 = vmatpush1.msra.mxu0 0.0
    %403 = vmatprep.subr.mxu0 0.0
    %404 = vmatpush1.msra.mxu0 0.0
    %405 = vmatprep.subr.mxu0 0.0
    %406 = vmatpush1.msra.mxu0 0.0
    %407 = vmatprep.subr.mxu0 0.0
    %408 = vmatpush1.msra.mxu0 0.0
    %409 = vmatprep.subr.mxu0 0.0
    %410 = vmatpush1.msra.mxu0 0.0
    %411 = vmatprep.subr.mxu0 0.0
    %412 = vmatpush1.msra.mxu0 0.0
    %413 = vmatprep.subr.mxu0 0.0
    %414 = vmatpush1.msra.mxu0 0.0
    %415 = vmatprep.subr.mxu0 0.0
    %416 = vmatpush1.msra.mxu0 0.0
    %417 = vmatprep.subr.mxu0 0.0
    %418 = vmatpush1.msra.mxu0 0.0
    %419 = vmatprep.subr.mxu0 0.0
    %420 = vmatpush1.msra.mxu0 0.0
    %421 = vmatprep.subr.mxu0 0.0
    %422 = vmatpush1.msra.mxu0 0.0
    %423 = vmatprep.mubr.f32.mxu0 0.0
    %v424 = vand.u32 %v130, 4294901760
    %v425 = vsub.f32 %v130, %v424
    %v426 = vand.u32 %v425, 4294901760
    %427 = vmatmul.mubr.f32.gmra.mrb[0].mxu0 %v426
    %v428 = vpop.f32.mrb[0].mxu0
    %v429 = vadd.f32 %v355, %v428
    %v430 = vpop.f32.mrb[0].mxu0
    %431 = vdwg.mxu0
    %432 = vmatprep.subr.mxu0 0.0
    %v433 = vand.u32 %v24, 4294901760
    %v434 = vsub.f32 %v24, %v433
    %v435 = vand.u32 %v434, 4294901760
    %436 = vmatpush1.msra.mxu0 %v435
    %437 = vmatprep.subr.mxu0 0.0
    %438 = vmatpush1.msra.mxu0 0.0
    %439 = vmatprep.subr.mxu0 0.0
    %440 = vmatpush1.msra.mxu0 0.0
    %441 = vmatprep.subr.mxu0 0.0
    %442 = vmatpush1.msra.mxu0 0.0
    %443 = vmatprep.subr.mxu0 0.0
    %444 = vmatpush1.msra.mxu0 0.0
    %445 = vmatprep.subr.mxu0 0.0
    %446 = vmatpush1.msra.mxu0 0.0
    %447 = vmatprep.subr.mxu0 0.0
    %448 = vmatpush1.msra.mxu0 0.0
    %449 = vmatprep.subr.mxu0 0.0
    %450 = vmatpush1.msra.mxu0 0.0
    %451 = vmatprep.subr.mxu0 0.0
    %452 = vmatpush1.msra.mxu0 0.0
    %453 = vmatprep.subr.mxu0 0.0
    %454 = vmatpush1.msra.mxu0 0.0
    %455 = vmatprep.subr.mxu0 0.0
    %456 = vmatpush1.msra.mxu0 0.0
    %457 = vmatprep.subr.mxu0 0.0
    %458 = vmatpush1.msra.mxu0 0.0
    %459 = vmatprep.subr.mxu0 0.0
    %460 = vmatpush1.msra.mxu0 0.0
    %461 = vmatprep.subr.mxu0 0.0
    %462 = vmatpush1.msra.mxu0 0.0
    %463 = vmatprep.subr.mxu0 0.0
    %464 = vmatpush1.msra.mxu0 0.0
    %465 = vmatprep.subr.mxu0 0.0
    %466 = vmatpush1.msra.mxu0 0.0
    %467 = vmatprep.subr.mxu0 0.0
    %468 = vmatpush1.msra.mxu0 0.0
    %469 = vmatprep.subr.mxu0 0.0
    %470 = vmatpush1.msra.mxu0 0.0
    %471 = vmatprep.subr.mxu0 0.0
    %472 = vmatpush1.msra.mxu0 0.0
    %473 = vmatprep.subr.mxu0 0.0
    %474 = vmatpush1.msra.mxu0 0.0
    %475 = vmatprep.subr.mxu0 0.0
    %476 = vmatpush1.msra.mxu0 0.0
    %477 = vmatprep.subr.mxu0 0.0
    %478 = vmatpush1.msra.mxu0 0.0
    %479 = vmatprep.subr.mxu0 0.0
    %480 = vmatpush1.msra.mxu0 0.0
    %481 = vmatprep.subr.mxu0 0.0
    %482 = vmatpush1.msra.mxu0 0.0
    %483 = vmatprep.subr.mxu0 0.0
    %484 = vmatpush1.msra.mxu0 0.0
    %485 = vmatprep.subr.mxu0 0.0
    %486 = vmatpush1.msra.mxu0 0.0
    %487 = vmatprep.subr.mxu0 0.0
    %488 = vmatpush1.msra.mxu0 0.0
    %489 = vmatprep.subr.mxu0 0.0
    %490 = vmatpush1.msra.mxu0 0.0
    %491 = vmatprep.subr.mxu0 0.0
    %492 = vmatpush1.msra.mxu0 0.0
    %493 = vmatprep.subr.mxu0 0.0
    %494 = vmatpush1.msra.mxu0 0.0
    %495 = vmatprep.subr.mxu0 0.0
    %496 = vmatpush1.msra.mxu0 0.0
    %497 = vmatprep.subr.mxu0 0.0
    %498 = vmatpush1.msra.mxu0 0.0
    %499 = vmatprep.mubr.f32.mxu0 0.0
    %v500 = vand.u32 %v130, 4294901760
    %501 = vmatmul.mubr.f32.gmra.mrb[0].mxu0 %v500
    %v502 = vpop.f32.mrb[0].mxu0
    %v503 = vadd.f32 %v429, %v502
    %v504 = vpop.f32.mrb[0].mxu0
    %505 = vdwg.mxu0
    %506 = vmatprep.subr.mxu0 0.0
    %v507 = vand.u32 %v24, 4294901760
    %508 = vmatpush1.msra.mxu0 %v507
    %509 = vmatprep.subr.mxu0 0.0
    %510 = vmatpush1.msra.mxu0 0.0
    %511 = vmatprep.subr.mxu0 0.0
    %512 = vmatpush1.msra.mxu0 0.0
    %513 = vmatprep.subr.mxu0 0.0
    %514 = vmatpush1.msra.mxu0 0.0
    %515 = vmatprep.subr.mxu0 0.0
    %516 = vmatpush1.msra.mxu0 0.0
    %517 = vmatprep.subr.mxu0 0.0
    %518 = vmatpush1.msra.mxu0 0.0
    %519 = vmatprep.subr.mxu0 0.0
    %520 = vmatpush1.msra.mxu0 0.0
    %521 = vmatprep.subr.mxu0 0.0
    %522 = vmatpush1.msra.mxu0 0.0
    %523 = vmatprep.subr.mxu0 0.0
    %524 = vmatpush1.msra.mxu0 0.0
    %525 = vmatprep.subr.mxu0 0.0
    %526 = vmatpush1.msra.mxu0 0.0
    %527 = vmatprep.subr.mxu0 0.0
    %528 = vmatpush1.msra.mxu0 0.0
    %529 = vmatprep.subr.mxu0 0.0
    %530 = vmatpush1.msra.mxu0 0.0
    %531 = vmatprep.subr.mxu0 0.0
    %532 = vmatpush1.msra.mxu0 0.0
    %533 = vmatprep.subr.mxu0 0.0
    %534 = vmatpush1.msra.mxu0 0.0
    %535 = vmatprep.subr.mxu0 0.0
    %536 = vmatpush1.msra.mxu0 0.0
    %537 = vmatprep.subr.mxu0 0.0
    %538 = vmatpush1.msra.mxu0 0.0
    %539 = vmatprep.subr.mxu0 0.0
    %540 = vmatpush1.msra.mxu0 0.0
    %541 = vmatprep.subr.mxu0 0.0
    %542 = vmatpush1.msra.mxu0 0.0
    %543 = vmatprep.subr.mxu0 0.0
    %544 = vmatpush1.msra.mxu0 0.0
    %545 = vmatprep.subr.mxu0 0.0
    %546 = vmatpush1.msra.mxu0 0.0
    %547 = vmatprep.subr.mxu0 0.0
    %548 = vmatpush1.msra.mxu0 0.0
    %549 = vmatprep.subr.mxu0 0.0
    %550 = vmatpush1.msra.mxu0 0.0
    %551 = vmatprep.subr.mxu0 0.0
    %552 = vmatpush1.msra.mxu0 0.0
    %553 = vmatprep.subr.mxu0 0.0
    %554 = vmatpush1.msra.mxu0 0.0
    %555 = vmatprep.subr.mxu0 0.0
    %556 = vmatpush1.msra.mxu0 0.0
    %557 = vmatprep.subr.mxu0 0.0
    %558 = vmatpush1.msra.mxu0 0.0
    %559 = vmatprep.subr.mxu0 0.0
    %560 = vmatpush1.msra.mxu0 0.0
    %561 = vmatprep.subr.mxu0 0.0
    %562 = vmatpush1.msra.mxu0 0.0
    %563 = vmatprep.subr.mxu0 0.0
    %564 = vmatpush1.msra.mxu0 0.0
    %565 = vmatprep.subr.mxu0 0.0
    %566 = vmatpush1.msra.mxu0 0.0
    %567 = vmatprep.subr.mxu0 0.0
    %568 = vmatpush1.msra.mxu0 0.0
    %569 = vmatprep.subr.mxu0 0.0
    %570 = vmatpush1.msra.mxu0 0.0
    %571 = vmatprep.mubr.f32.mxu0 0.0
    %v572 = vand.u32 %v130, 4294901760
    %573 = vmatmul.mubr.f32.gmra.mrb[0].mxu0 %v572
    %v574 = vpop.f32.mrb[0].mxu0
    %v575 = vadd.f32 %v503, %v574
    %v576 = vpop.f32.mrb[0].mxu0
    %577 = vdwg.mxu0
    %v578 = vmul.f32 %v118, 0.5
    %580 = vrot.lane.b32.xlu0 %v578, 1
    %v581 = vpop.permute.xlu0 %580
    %v583 = vsub.f32 %v575, %v581
    %v585 = vcombine.high %v575, %v575
    %v587 = vunpack.c.l.s4 1983009808
    %v588 = vunpack.c.0.s8 %v587
    %v589 = vlaneseq
    %v590 = vshrl.u32 %v589, 7
    %v591 = vsub.s32 %v588, %v590
    %v592 = vrot.slane %v575, %v591
    %v594 = vunpack.c.l.s4 1983009808
    %v595 = vunpack.c.0.s8 %v594
    %v596 = vlaneseq
    %v597 = vshrl.u32 %v596, 7
    %v598 = vsub.s32 %v595, %v597
    %v599 = vrot.slane %v585, %v598
    %v600 = vcombine.high %v592, %v592
    %v601 = vcombine.high %v599, %v599
    %vm606 = vcmask 66560
    %607 = vst.msk [vmem:[#allocation2] sm:$0x3] %vm606, %v592
    %608 = vst.msk [vmem:[#allocation2 + $0xa] sm:$0x3] %vm606, %v600
    %609 = vst.msk [vmem:[#allocation2 + $0x14] sm:$0x3] %vm606, %v599
    %610 = vst.msk [vmem:[#allocation2 + $0x1e] sm:$0x3] %vm606, %v601
    %v612 = vcombine.high %v583, %v583
    %v614 = vunpack.c.l.s4 1983009808
    %v615 = vunpack.c.0.s8 %v614
    %v616 = vlaneseq
    %v617 = vshrl.u32 %v616, 7
    %v618 = vsub.s32 %v615, %v617
    %v619 = vrot.slane %v583, %v618
    %v621 = vunpack.c.l.s4 1983009808
    %v622 = vunpack.c.0.s8 %v621
    %v623 = vlaneseq
    %v624 = vshrl.u32 %v623, 7
    %v625 = vsub.s32 %v622, %v624
    %v626 = vrot.slane %v612, %v625
    %v627 = vcombine.high %v619, %v619
    %v628 = vcombine.high %v626, %v626
    %629 = vrot.lane.b32.xlu0 %v619, 127
    %v630 = vpop.permute.xlu0 %629
    %631 = vrot.lane.b32.xlu0 %v627, 127
    %v632 = vpop.permute.xlu0 %631
    %633 = vrot.lane.b32.xlu0 %v626, 127
    %v634 = vpop.permute.xlu0 %633
    %635 = vrot.lane.b32.xlu0 %v628, 127
    %v636 = vpop.permute.xlu0 %635
    %vm641 = vcmask 58368
    %642 = vst.msk [vmem:[#allocation2 + $0x2] sm:$0x3] %vm641, %v630
    %643 = vst.msk [vmem:[#allocation2 + $0xc] sm:$0x3] %vm641, %v632
    %644 = vst.msk [vmem:[#allocation2 + $0x16] sm:$0x3] %vm641, %v634
    %645 = vst.msk [vmem:[#allocation2 + $0x20] sm:$0x3] %vm641, %v636
    %v648 = vunpack.c.l.s4 269488144
    %v649 = vunpack.c.0.s8 %v648
    %v650 = vlaneseq
    %v651 = vshrl.u32 %v650, 7
    %v652 = vsub.s32 %v649, %v651
    %v653 = vrot.slane %v128, %v652
    %v655 = vunpack.c.l.s4 842150450
    %v656 = vunpack.c.0.s8 %v655
    %v657 = vlaneseq
    %v658 = vshrl.u32 %v657, 7
    %v659 = vsub.s32 %v656, %v658
    %v660 = vrot.slane %v128, %v659
    %v662 = vunpack.c.l.s4 1414812756
    %v663 = vunpack.c.0.s8 %v662
    %v664 = vlaneseq
    %v665 = vshrl.u32 %v664, 7
    %v666 = vsub.s32 %v663, %v665
    %v667 = vrot.slane %v128, %v666
    %v669 = vunpack.c.l.s4 1987475062
    %v670 = vunpack.c.0.s8 %v669
    %v671 = vlaneseq
    %v672 = vshrl.u32 %v671, 7
    %v673 = vsub.s32 %v670, %v672
    %v674 = vrot.slane %v128, %v673
    %vm679 = vcmask 1024
    %680 = vst.msk [vmem:[#allocation2 + $0x4] sm:$0x3] %vm679, %v653
    %681 = vst.msk [vmem:[#allocation2 + $0xe] sm:$0x3] %vm679, %v660
    %682 = vst.msk [vmem:[#allocation2 + $0x18] sm:$0x3] %vm679, %v667
    %683 = vst.msk [vmem:[#allocation2 + $0x22] sm:$0x3] %vm679, %v674
    %v685 = vcombine.high %v116, %v116
    %v687 = vunpack.c.l.s4 1983009808
    %v688 = vunpack.c.0.s8 %v687
    %v689 = vlaneseq
    %v690 = vshrl.u32 %v689, 7
    %v691 = vsub.s32 %v688, %v690
    %v692 = vrot.slane %v116, %v691
    %v694 = vunpack.c.l.s4 1983009808
    %v695 = vunpack.c.0.s8 %v694
    %v696 = vlaneseq
    %v697 = vshrl.u32 %v696, 7
    %v698 = vsub.s32 %v695, %v697
    %v699 = vrot.slane %v685, %v698
    %v700 = vcombine.high %v692, %v692
    %v701 = vcombine.high %v699, %v699
    %706 = vst.msk [vmem:[#allocation2 + $0x6] sm:$0x3] %vm641, %v692
    %707 = vst.msk [vmem:[#allocation2 + $0x10] sm:$0x3] %vm641, %v700
    %708 = vst.msk [vmem:[#allocation2 + $0x1a] sm:$0x3] %vm641, %v699
    %709 = vst.msk [vmem:[#allocation2 + $0x24] sm:$0x3] %vm641, %v701
    %v710 = vcombine.high %v118, %v118
    %v712 = vunpack.c.l.s4 1983009808
    %v713 = vunpack.c.0.s8 %v712
    %v714 = vlaneseq
    %v715 = vshrl.u32 %v714, 7
    %v716 = vsub.s32 %v713, %v715
    %v717 = vrot.slane %v118, %v716
    %v719 = vunpack.c.l.s4 1983009808
    %v720 = vunpack.c.0.s8 %v719
    %v721 = vlaneseq
    %v722 = vshrl.u32 %v721, 7
    %v723 = vsub.s32 %v720, %v722
    %v724 = vrot.slane %v710, %v723
    %v725 = vcombine.high %v717, %v717
    %v726 = vcombine.high %v724, %v724
    %731 = vst.msk [vmem:[#allocation2 + $0x8] sm:$0x3] %vm641, %v717
    %732 = vst.msk [vmem:[#allocation2 + $0x12] sm:$0x3] %vm641, %v725
    %733 = vst.msk [vmem:[#allocation2 + $0x1c] sm:$0x3] %vm641, %v724
    %734 = vst.msk [vmem:[#allocation2 + $0x26] sm:$0x3] %vm641, %v726
    // Predicated region
    $region18: #{tpu_custom_call.1} parent=1 // pred_check
      _
    $region19: #{tpu_custom_call.1} parent=1 // pred_check_branch
      %736 = sbr.rel (0) target = $region21
    $region20: #{tpu_custom_call.1} parent=1 // pred_region
      %s738 = ssub.s32 640, 160
      %739 = vsyncadd [#allocation3], %s738
      %s740 = sshll.u32 [#allocation2], 4
      %s741 = int_to_ptr.vmem [resolvable:$true] %s740
      %746 = dma.vmem_to_hbm [thread:$0]  %s741, 160, %s4, [#allocation3], 160, 160, 10
    $region21: #{tpu_custom_call.1} parent=1 // pred_fallthru
      _
    // Predicated region
    $region22: #{tpu_custom_call.1} parent=1 // pred_check
      _
    $region23: #{tpu_custom_call.1} parent=1 // pred_check_branch
      %748 = sbr.rel (0) target = $region25
    $region24: #{tpu_custom_call.1} parent=1 // pred_region
      %749 = dma.done [#allocation3], 640
    $region25: #{tpu_custom_call.1} parent=1 // pred_fallthru
      _
    %750 = vsyncpa [#allocation3], 1

</llo_original>
